<compile_context>
chip_gen: v6e
topology: v6e:2x2x1
jax: 0.10.0
libtpu: 0.0.40
codegen_flags: <defaults>
</compile_context>

<pallas_src>
import jax
import jax.numpy as jnp
from jax.experimental import pallas as pl
from jax.experimental.pallas import tpu as pltpu


# ---------------------------------------------------------------------------
# Tunables / generation-aware budgeting.
_MAX_TILE_L = 2048                 # past ~1024 the streamed pipeline is at HBM roofline
_DEFAULT_VMEM_BYTES = 64 * 1024 * 1024


def _vmem_limit_bytes() -> int:
    """~75% of physical VMEM, capped at 100 MiB.

    v5e/v6e (128 MiB physical) -> 96-100 MiB; v7x (64 MiB per TC) -> 48 MiB.
    Falls back to 64 MiB if the TPU info query is unavailable (e.g. interpret).
    """
    try:
        phys = pltpu.get_tpu_info().vmem_capacity_bytes
    except Exception:
        phys = _DEFAULT_VMEM_BYTES
    return min(int(phys * 3 // 4), 100 * 1024 * 1024)


def _choose_tiles(B, L, H, enc_itemsize, w_itemsize, vmem_limit):
    """Pick (tile_l, n_h, tile_h, padded_L).

    tile_l is sized so the double-buffered streamed blocks
    (enc (B,tile_l,tile_h) + W_attn.T (2H,tile_l) + b (1,tile_l)) use ~60% of
    the VMEM limit; it is a multiple of 256 when possible (256-wide MXU on
    v6e/v7x), else 128, and must divide the (possibly padded) L.
    """
    # Optional parallel split of H (targets v7x's 2 TensorCores).  Only split
    # when each chunk stays lane-aligned (multiple of 128) and the redundant
    # per-chunk W_attn restream is small next to the enc stream.
    n_h = 2 if (H % 256 == 0 and B >= 4) else 1
    tile_h = H // n_h

    budget = int(vmem_limit * 0.6)
    per_l_bytes = B * tile_h * enc_itemsize + (2 * H + 1) * w_itemsize
    max_tile_l = min(max(128, budget // (2 * per_l_bytes)), _MAX_TILE_L)

    if L <= max_tile_l:
        return L, n_h, tile_h, L            # single whole-L tile, no padding

    t = (max_tile_l // 256) * 256 if max_tile_l >= 256 else 128
    tt = t
    while tt >= 128:                        # prefer a tile that divides L exactly
        if L % tt == 0:
            return tt, n_h, tile_h, L
        tt -= 128
    # Awkward L: zero-pad along L (exact: padded enc rows contribute 0).
    # TODO(synk): the per-call jnp.pad of encoder_output costs one extra
    # read+write of enc; pad once upstream for production shapes.
    padded = ((L + t - 1) // t) * t
    return t, n_h, tile_h, padded


# ---------------------------------------------------------------------------
# Kernel: streamed L reduction of attn_applied = softmax_batch(sim) @ enc.
def attention_weighted_sum_kernel(ah_ref, enc_ref, w_attn_ref, b_attn_ref,
                                  out_ref, acc_ref):
    li = pl.program_id(1)                   # L (reduction) axis -- innermost

    @pl.when(li == 0)
    def _():
        acc_ref[...] = jnp.zeros_like(acc_ref)

    # similarity tile: one fused MXU matmul over K = 2H -> (B, tile_l), f32
    sim = jnp.dot(ah_ref[...], w_attn_ref[...],
                  preferred_element_type=jnp.float32) + b_attn_ref[...]

    # Legacy nn.Softmax() (dim=None on 3-D) -> softmax over the BATCH axis.
    # Independent per L column, so per-L-tile computation is exact.
    # Exact division (not the approx reciprocal) so weights sum to 1.
    m = jnp.max(sim, axis=0, keepdims=True)
    e = jnp.exp(sim - m)
    p = e / jnp.sum(e, axis=0, keepdims=True)            # (B, tile_l), f32

    # bmm(attn_weight, encoder_output) for this (L, H) tile; f32 accumulation.
    contrib = jnp.einsum('bql,blh->bqh',
                         p[:, None, :].astype(enc_ref.dtype), enc_ref[...],
                         preferred_element_type=jnp.float32)     # (B, 1, tile_h)
    acc_ref[...] += contrib[:, 0, :]

    @pl.when(li == pl.num_programs(1) - 1)
    def _():
        out_ref[...] = acc_ref[...].astype(out_ref.dtype)


# ---------------------------------------------------------------------------
def prepare_attention_params(w_attn, b_attn, w_comb, b_comb,
                             compute_dtype=jnp.float32):
    """One-time (model setup, NOT per decode step) weight preparation:
    transpose the torch-layout Linear weights, split the combine weight, and
    optionally narrow the matmul operands (biases stay f32)."""
    L, H2 = w_attn.shape
    H = H2 // 2
    return {
        "w_attn_t":    jnp.asarray(w_attn.T, compute_dtype),         # (2H, L)
        "b_attn":      jnp.asarray(b_attn, jnp.float32).reshape(1, L),
        "w_comb_ap_t": jnp.asarray(w_comb[:, :H].T, compute_dtype),  # (H, H)
        "w_comb_a_t":  jnp.asarray(w_comb[:, H:].T, compute_dtype),  # (H, H)
        "b_comb":      jnp.asarray(b_comb, jnp.float32).reshape(1, H),
    }


def _attention_forward_impl(encoder_output, decoder_input_embeded, decoder_hidden,
                            params):
    """encoder_output (B,L,H), decoder_input_embeded (B,1,H), decoder_hidden (1,B,H)."""
    B, L, H = encoder_output.shape
    cdt = params["w_attn_t"].dtype

    # Tiny glue (fused under jit): squeeze/permute and fuse the first concat.
    a = decoder_input_embeded[:, 0, :]                             # (B, H)
    h = decoder_hidden[0]                                          # (B, H)
    ah = jnp.concatenate([a, h], axis=-1).astype(cdt)              # (B, 2H)

    # Stream encoder_output in its own dtype -- no per-call wrapper cast.
    enc = encoder_output

    vmem_limit = _vmem_limit_bytes()
    tile_l, n_h, tile_h, l_pad = _choose_tiles(
        B, L, H, enc.dtype.itemsize, cdt.itemsize, vmem_limit)

    w_attn_t = params["w_attn_t"]
    b_attn = params["b_attn"]
    if l_pad != L:
        pad = l_pad - L
        enc = jnp.pad(enc, ((0, 0), (0, pad), (0, 0)))
        w_attn_t = jnp.pad(w_attn_t, ((0, 0), (0, pad)))
        b_attn = jnp.pad(b_attn, ((0, 0), (0, pad)))
    n_l = l_pad // tile_l

    grid_spec = pltpu.PrefetchScalarGridSpec(
        num_scalar_prefetch=0,
        grid=(n_h, n_l),                                           # (parallel H, reduce L)
        in_specs=[
            pl.BlockSpec((B, 2 * H), lambda hi, li: (0, 0)),              # [a; h] resident
            pl.BlockSpec((B, tile_l, tile_h), lambda hi, li: (0, li, hi)),  # enc streamed
            pl.BlockSpec((2 * H, tile_l), lambda hi, li: (0, li)),        # W_attn.T tile
            pl.BlockSpec((1, tile_l), lambda hi, li: (0, li)),            # b_attn tile
        ],
        out_specs=pl.BlockSpec((B, tile_h), lambda hi, li: (0, hi)),      # attn_applied
        scratch_shapes=[pltpu.VMEM((B, tile_h), jnp.float32)],            # f32 accumulator
    )

    attn_applied = pl.pallas_call(
        attention_weighted_sum_kernel,
        out_shape=jax.ShapeDtypeStruct((B, H), jnp.float32),
        grid_spec=grid_spec,
        compiler_params=pltpu.CompilerParams(
            dimension_semantics=("parallel", "arbitrary"),
            vmem_limit_bytes=vmem_limit,
        ),
    )(ah, enc, w_attn_t, b_attn)

    # Combine + ReLU as trailing XLA ops: tiny compute, keeps the (H,H) weight
    # blocks out of kernel VMEM (frees it for a bigger enc tile, esp. on v7x).
    out = (jnp.dot(attn_applied.astype(cdt), params["w_comb_ap_t"],
                   preferred_element_type=jnp.float32)
           + jnp.dot(a.astype(cdt), params["w_comb_a_t"],
                     preferred_element_type=jnp.float32)
           + params["b_comb"])
    out = jnp.maximum(out, 0.0)

    # TODO(synk): at toy decode shapes the fixed pallas_call/XLA launch cost
    # dominates; batch several decode steps per call (leading grid axis) to amortize.
    # TODO(synk): for real models with H < 128, fold L into the last axis to
    # present a lane-dense enc layout (H=32 fills only 1/4 of each vreg row).
    return out[:, None, :].astype(jnp.float32)                      # (B, 1, H)


attention_forward = jax.jit(_attention_forward_impl)


# ---------------------------------------------------------------------------
def _reference_forward(encoder_output, decoder_input_embeded, decoder_hidden,
                       w_attn, b_attn, w_comb, b_comb):
    # Pure-JAX reference mirroring the PyTorch forward (legacy softmax dim=0).
    dh = jnp.transpose(decoder_hidden, (1, 0, 2))                      # (B,1,H)
    cat1 = jnp.concatenate([decoder_input_embeded, dh], axis=-1)       # (B,1,2H)
    sim = cat1 @ w_attn.T + b_attn                                     # (B,1,L)
    attn_weight = jax.nn.softmax(sim, axis=0)                          # legacy dim=0
    attn_applied = jnp.einsum('btl,blh->bth', attn_weight, encoder_output)
    cat2 = jnp.concatenate([attn_applied, decoder_input_embeded], axis=-1)
    return jnp.maximum(cat2 @ w_comb.T + b_comb, 0.0)


if __name__ == "__main__":
    B, L, H = 2, 8, 32   # batch, padded_len, hidden_size

    key = jax.random.PRNGKey(0)
    k = jax.random.split(key, 7)
    encoder_output = jax.random.normal(k[0], (B, L, H), dtype=jnp.float32)
    decoder_input_embeded = jax.random.normal(k[1], (B, 1, H), dtype=jnp.float32)
    decoder_hidden = jax.random.normal(k[2], (1, B, H), dtype=jnp.float32)

    # Parameters (shapes follow nn.Linear in __init__).
    w_attn = jax.random.normal(k[3], (L, 2 * H), dtype=jnp.float32) * 0.1
    b_attn = jax.random.normal(k[4], (L,), dtype=jnp.float32) * 0.1
    w_comb = jax.random.normal(k[5], (H, 2 * H), dtype=jnp.float32) * 0.1
    b_comb = jax.random.normal(k[6], (H,), dtype=jnp.float32) * 0.1

    ref = _reference_forward(encoder_output, decoder_input_embeded, decoder_hidden,
                             w_attn, b_attn, w_comb, b_comb)

    # f32 path.  Softmax is exact; tolerance covers TPU default-precision
    # (bf16-pass) MXU matmul differences between the kernel and the XLA reference.
    params_f32 = prepare_attention_params(w_attn, b_attn, w_comb, b_comb, jnp.float32)
    out_f32 = jax.block_until_ready(
        attention_forward(encoder_output, decoder_input_embeded, decoder_hidden,
                          params_f32))
    assert out_f32.shape == (B, 1, H)
    assert jnp.allclose(out_f32, ref, atol=1e-2, rtol=1e-2), (
        f"f32 max abs err {float(jnp.max(jnp.abs(out_f32 - ref)))}")

    # bf16 storage path: weights narrowed ONCE at prepare time, encoder_output
    # stored bf16 upstream (no per-call cast) -> halves streamed HBM bytes.
    params_bf16 = prepare_attention_params(w_attn, b_attn, w_comb, b_comb, jnp.bfloat16)
    enc_bf16 = encoder_output.astype(jnp.bfloat16)
    out_bf16 = jax.block_until_ready(
        attention_forward(enc_bf16, decoder_input_embeded, decoder_hidden,
                          params_bf16))
    assert out_bf16.shape == (B, 1, H)
    assert jnp.allclose(out_bf16, ref, atol=5e-2, rtol=5e-2), (
        f"bf16 max abs err {float(jnp.max(jnp.abs(out_bf16 - ref)))}")

    print("KERNEL_OK")
</pallas_src>

<mosaic_0001>
module attributes {stable_mosaic.version = 11 : i64} {
  func.func @attention_weighted_sum_kernel(%arg0: i32, %arg1: i32, %arg2: memref<2x64xf32, #tpu.memory_space<vmem>>, %arg3: memref<2x8x32xf32, #tpu.memory_space<vmem>>, %arg4: memref<64x8xf32, #tpu.memory_space<vmem>>, %arg5: memref<1x8xf32, #tpu.memory_space<vmem>>, %arg6: memref<2x32xf32, #tpu.memory_space<vmem>>, %arg7: memref<2x32xf32, #tpu.memory_space<vmem>>) attributes {dimension_semantics = [#tpu.dimension_semantics<parallel>, #tpu.dimension_semantics<arbitrary>], iteration_bounds = array<i64: 1, 1>, scalar_prefetch = 0 : i64, scratch_operands = 1 : i64, tpu.core_type = #tpu.core_type<tc>, window_params = [{pipeline_mode = #tpu.pipeline_mode<synchronous>, transform_indices = @transform_0, window_bounds = array<i64: 2, 64>}, {transform_indices = @transform_1, window_bounds = array<i64: 2, 8, 32>}, {transform_indices = @transform_2, window_bounds = array<i64: 64, 8>}, {transform_indices = @transform_3, window_bounds = array<i64: 1, 8>}, {transform_indices = @transform_4, window_bounds = array<i64: 2, 32>}]} {
    %c0_i32 = arith.constant 0 : i32
    %0 = arith.cmpi eq, %arg1, %c0_i32 : i32
    %1 = arith.extui %0 : i1 to i32
    %c0_i32_0 = arith.constant 0 : i32
    %2 = arith.cmpi ne, %1, %c0_i32_0 : i32
    scf.if %2 {
      %cst_18 = arith.constant 0.000000e+00 : f32
      %28 = vector.broadcast %cst_18 : f32 to vector<2x32xf32>
      %c0_19 = arith.constant 0 : index
      %c0_20 = arith.constant 0 : index
      %29 = vector.load %arg7[%c0_19, %c0_20] : memref<2x32xf32, #tpu.memory_space<vmem>>, vector<2x32xf32>
      tpu.vector_store %arg7[%c0_19, %c0_20], %28 {strides = array<i32>} : memref<2x32xf32, #tpu.memory_space<vmem>>, vector<2x32xf32>,
    } else {
    }
    %c0 = arith.constant 0 : index
    %c0_1 = arith.constant 0 : index
    %3 = vector.load %arg2[%c0, %c0_1] : memref<2x64xf32, #tpu.memory_space<vmem>>, vector<2x64xf32>
    %c0_2 = arith.constant 0 : index
    %c0_3 = arith.constant 0 : index
    %4 = vector.load %arg4[%c0_2, %c0_3] : memref<64x8xf32, #tpu.memory_space<vmem>>, vector<64x8xf32>
    %cst = arith.constant dense<0.000000e+00> : vector<2x8xf32>
    %5 = tpu.matmul %3, %4, %cst {dimension_numbers = #tpu.dot_dimension_numbers<[1], [0], [0], [1], [0, 0, 1, 1], [], []>} : vector<2x64xf32>, vector<64x8xf32>, vector<2x8xf32> -> vector<2x8xf32>
    %c0_4 = arith.constant 0 : index
    %c0_5 = arith.constant 0 : index
    %6 = vector.load %arg5[%c0_4, %c0_5] : memref<1x8xf32, #tpu.memory_space<vmem>>, vector<1x8xf32>
    %7 = vector.broadcast %6 : vector<1x8xf32> to vector<2x8xf32>
    %8 = arith.addf %5, %7 : vector<2x8xf32>
    %cst_6 = arith.constant dense<0xFF800000> : vector<8xf32>
    %9 = vector.multi_reduction <maximumf>, %8, %cst_6 [0] : vector<2x8xf32> to vector<8xf32>
    %10 = vector.shape_cast %9 : vector<8xf32> to vector<1x8xf32>
    %11 = vector.broadcast %10 : vector<1x8xf32> to vector<2x8xf32>
    %12 = arith.subf %8, %11 : vector<2x8xf32>
    %13 = math.exp %12 : vector<2x8xf32>
    %cst_7 = arith.constant dense<0.000000e+00> : vector<8xf32>
    %14 = vector.multi_reduction <add>, %13, %cst_7 [0] : vector<2x8xf32> to vector<8xf32>
    %15 = vector.shape_cast %14 : vector<8xf32> to vector<1x8xf32>
    %16 = vector.broadcast %15 : vector<1x8xf32> to vector<2x8xf32>
    %17 = arith.divf %13, %16 : vector<2x8xf32>
    %18 = vector.shape_cast %17 : vector<2x8xf32> to vector<2x1x8xf32>
    %c0_8 = arith.constant 0 : index
    %c0_9 = arith.constant 0 : index
    %c0_10 = arith.constant 0 : index
    %19 = vector.load %arg3[%c0_8, %c0_9, %c0_10] : memref<2x8x32xf32, #tpu.memory_space<vmem>>, vector<2x8x32xf32>
    "tpu.trace_start"() <{level = 10 : i32, message = "bql,blh->bqh"}> : () -> ()
    %cst_11 = arith.constant dense<0.000000e+00> : vector<2x1x32xf32>
    %20 = tpu.matmul %18, %19, %cst_11 {dimension_numbers = #tpu.dot_dimension_numbers<[2], [1], [1], [2], [0, 0, 0, 1, 1, 2], [0], [0]>} : vector<2x1x8xf32>, vector<2x8x32xf32>, vector<2x1x32xf32> -> vector<2x1x32xf32>
    "tpu.trace_stop"() : () -> ()
    %c0_12 = arith.constant 0 : index
    %c0_13 = arith.constant 0 : index
    %21 = vector.load %arg7[%c0_12, %c0_13] : memref<2x32xf32, #tpu.memory_space<vmem>>, vector<2x32xf32>
    %22 = vector.shape_cast %20 : vector<2x1x32xf32> to vector<2x32xf32>
    %23 = arith.addf %21, %22 : vector<2x32xf32>
    %c0_14 = arith.constant 0 : index
    %c0_15 = arith.constant 0 : index
    %24 = vector.load %arg7[%c0_14, %c0_15] : memref<2x32xf32, #tpu.memory_space<vmem>>, vector<2x32xf32>
    tpu.vector_store %arg7[%c0_14, %c0_15], %23 {strides = array<i32>} : memref<2x32xf32, #tpu.memory_space<vmem>>, vector<2x32xf32>,
    %c0_i32_16 = arith.constant 0 : i32
    %25 = arith.cmpi eq, %arg1, %c0_i32_16 : i32
    %26 = arith.extui %25 : i1 to i32
    %c0_i32_17 = arith.constant 0 : i32
    %27 = arith.cmpi ne, %26, %c0_i32_17 : i32
    scf.if %27 {
      %c0_18 = arith.constant 0 : index
      %c0_19 = arith.constant 0 : index
      %28 = vector.load %arg7[%c0_18, %c0_19] : memref<2x32xf32, #tpu.memory_space<vmem>>, vector<2x32xf32>
      %c0_20 = arith.constant 0 : index
      %c0_21 = arith.constant 0 : index
      %29 = vector.load %arg6[%c0_20, %c0_21] : memref<2x32xf32, #tpu.memory_space<vmem>>, vector<2x32xf32>
      tpu.vector_store %arg6[%c0_20, %c0_21], %28 {strides = array<i32>} : memref<2x32xf32, #tpu.memory_space<vmem>>, vector<2x32xf32>,
    } else {
    }
    return
  }
  func.func @transform_0(%arg0: i32, %arg1: i32) -> (i32, i32) {
    %c0_i32 = arith.constant 0 : i32
    %c0_i32_0 = arith.constant 0 : i32
    %c0_i32_1 = arith.constant 0 : i32
    return %c0_i32, %c0_i32_0 : i32, i32
  }
  func.func @transform_1(%arg0: i32, %arg1: i32) -> (i32, i32, i32) {
    %c0_i32 = arith.constant 0 : i32
    %c0_i32_0 = arith.constant 0 : i32
    return %c0_i32, %arg1, %arg0 : i32, i32, i32
  }
  func.func @transform_2(%arg0: i32, %arg1: i32) -> (i32, i32) {
    %c0_i32 = arith.constant 0 : i32
    %c0_i32_0 = arith.constant 0 : i32
    return %c0_i32, %arg1 : i32, i32
  }
  func.func @transform_3(%arg0: i32, %arg1: i32) -> (i32, i32) {
    %c0_i32 = arith.constant 0 : i32
    %c0_i32_0 = arith.constant 0 : i32
    return %c0_i32, %arg1 : i32, i32
  }
  func.func @transform_4(%arg0: i32, %arg1: i32) -> (i32, i32) {
    %c0_i32 = arith.constant 0 : i32
    %c0_i32_0 = arith.constant 0 : i32
    return %c0_i32, %arg0 : i32, i32
  }
}

</mosaic_0001>

<llo_original>
// kernel: _attention_forward_impl.1
$region0: #{_attention_forward_impl.1}
  #allocation0 [shape = 'u32[]', space=smem, size = 0x4, offset = 0x4, fixed_abs, tag = 'smem constant byte address 0x4 - core index']
  #allocation1 [shape = 'u32[144,128]{1,0:T(1,128)}', space=vmem, size = 0x12000, scoped, tag = 'internal scratch']
  #allocation2 [shape = 'f32[2,32]{1,0:T(2,128)}', space=vmem, size = 0x400, scoped, tag = 'scratch operand']
  %s0 = inlined_call_operand.vmem [shape: f32[2,64], index: 0, kind: input, shape index: {}]
  %s1 = inlined_call_operand.vmem [shape: f32[2,8,32], index: 1, kind: input, shape index: {}]
  %s2 = inlined_call_operand.vmem [shape: f32[64,8], index: 2, kind: input, shape index: {}]
  %s3 = inlined_call_operand.vmem [shape: f32[1,8], index: 3, kind: input, shape index: {}]
  %s4 = inlined_call_operand.vmem [shape: f32[2,32], index: 4, kind: output, shape index: {}]
  %s5 = sld [smem:[#allocation0]]
  $region34: #{_attention_forward_impl.1} parent=0
    _
  %s7 = ssub.s32 1, %s5
  %s8 = scalar_select 0, %s7, %s5
  // Predicated region
  $region2: #{_attention_forward_impl.1} parent=0 // pred_check
    _
  $region3: #{_attention_forward_impl.1} parent=0 // pred_check_branch
    %10 = sbr.rel (0) target = $region5
  $region4: #{_attention_forward_impl.1} parent=0 // pred_region
    _
  $region5: #{_attention_forward_impl.1} parent=0 // pred_fallthru
    _
  // Predicated region
  $region6: #{_attention_forward_impl.1} parent=0 // pred_check
    _
  $region7: #{_attention_forward_impl.1} parent=0 // pred_check_branch
    %12 = sbr.rel (0) target = $region9
  $region8: #{_attention_forward_impl.1} parent=0 // pred_region
    _
  $region9: #{_attention_forward_impl.1} parent=0 // pred_fallthru
    _
  // Predicated region
  $region10: #{_attention_forward_impl.1} parent=0 // pred_check
    _
  $region11: #{_attention_forward_impl.1} parent=0 // pred_check_branch
    %14 = sbr.rel (0) target = $region13
  $region12: #{_attention_forward_impl.1} parent=0 // pred_region
    _
  $region13: #{_attention_forward_impl.1} parent=0 // pred_fallthru
    _
  // Predicated region
  $region14: #{_attention_forward_impl.1} parent=0 // pred_check
    _
  $region15: #{_attention_forward_impl.1} parent=0 // pred_check_branch
    %16 = sbr.rel (0) target = $region17
  $region16: #{_attention_forward_impl.1} parent=0 // pred_region
    _
  $region17: #{_attention_forward_impl.1} parent=0 // pred_fallthru
    _
  %p17 = scmp.eq.s32.totalorder 0, 0
  // Predicated region
  $region18: #{_attention_forward_impl.1} parent=0 // pred_check
    %p18 = pneg %p17
  $region19: #{_attention_forward_impl.1} parent=0 // pred_check_branch
    %20 = sbr.rel (%p18) target = $region21
  $region20: #{_attention_forward_impl.1} parent=0 // pred_region
    %vm21 = vcmask 254976
    %22 = vst.msk [vmem:[#allocation2] sm:$0x3] %vm21, 0.0
  $region21: #{_attention_forward_impl.1} parent=0 // pred_fallthru
    _
  %v23 = vld [vmem:[%s0] sm:$0x3]
  %v24 = vld [vmem:[%s2] sm:$0xff]
  %v25 = vld [vmem:[%s2 + $0x8] sm:$0xff]
  %v26 = vld [vmem:[%s2 + $0x10] sm:$0xff]
  %v27 = vld [vmem:[%s2 + $0x18] sm:$0xff]
  %v28 = vld [vmem:[%s2 + $0x20] sm:$0xff]
  %v29 = vld [vmem:[%s2 + $0x28] sm:$0xff]
  %v30 = vld [vmem:[%s2 + $0x30] sm:$0xff]
  %v31 = vld [vmem:[%s2 + $0x38] sm:$0xff]
  %v32 = vld [vmem:[%s3] sm:$0x1]
  %v34 = vlaneseq
  %v35 = vshrl.u32 %v34, 7
  %v36 = vsub.s32 0, %v35
  %v37 = vrot.slane %v32, %v36
  %vm39 = vcmask 523264
  %v41 = vsel %vm39, %v23, 0
  %43 = vmatprep.subr.mxu0 0.0
  %44 = vmatpush1.msra.mxu0 0.0
  %45 = vmatprep.subr.mxu0 0.0
  %46 = vmatpush1.msra.mxu0 0.0
  %47 = vmatprep.subr.mxu0 0.0
  %48 = vmatpush1.msra.mxu0 0.0
  %49 = vmatprep.subr.mxu0 0.0
  %50 = vmatpush1.msra.mxu0 0.0
  %51 = vmatprep.subr.mxu0 0.0
  %52 = vmatpush1.msra.mxu0 0.0
  %53 = vmatprep.subr.mxu0 0.0
  %54 = vmatpush1.msra.mxu0 0.0
  %55 = vmatprep.subr.mxu0 0.0
  %56 = vmatpush1.msra.mxu0 0.0
  %57 = vmatprep.subr.mxu0 0.0
  %58 = vmatpush1.msra.mxu0 0.0
  %59 = vmatprep.subr.mxu0 0.0
  %60 = vmatpush1.msra.mxu0 %v31
  %61 = vmatprep.subr.mxu0 0.0
  %62 = vmatpush1.msra.mxu0 %v30
  %63 = vmatprep.subr.mxu0 0.0
  %64 = vmatpush1.msra.mxu0 %v29
  %65 = vmatprep.subr.mxu0 0.0
  %66 = vmatpush1.msra.mxu0 %v28
  %67 = vmatprep.subr.mxu0 0.0
  %68 = vmatpush1.msra.mxu0 %v27
  %69 = vmatprep.subr.mxu0 0.0
  %70 = vmatpush1.msra.mxu0 %v26
  %71 = vmatprep.subr.mxu0 0.0
  %72 = vmatpush1.msra.mxu0 %v25
  %73 = vmatprep.subr.mxu0 0.0
  %74 = vmatpush1.msra.mxu0 %v24
  %75 = vmatprep.subr.mxu0 0.0
  %76 = vmatpush2.msra.mxu0 0.0
  %77 = vmatprep.subr.mxu0 0.0
  %78 = vmatpush2.msra.mxu0 0.0
  %79 = vmatprep.subr.mxu0 0.0
  %80 = vmatpush2.msra.mxu0 0.0
  %81 = vmatprep.subr.mxu0 0.0
  %82 = vmatpush2.msra.mxu0 0.0
  %83 = vmatprep.subr.mxu0 0.0
  %84 = vmatpush2.msra.mxu0 0.0
  %85 = vmatprep.subr.mxu0 0.0
  %86 = vmatpush2.msra.mxu0 0.0
  %87 = vmatprep.subr.mxu0 0.0
  %88 = vmatpush2.msra.mxu0 0.0
  %89 = vmatprep.subr.mxu0 0.0
  %90 = vmatpush2.msra.mxu0 0.0
  %91 = vmatprep.subr.mxu0 0.0
  %92 = vmatpush2.msra.mxu0 0.0
  %93 = vmatprep.subr.mxu0 0.0
  %94 = vmatpush2.msra.mxu0 0.0
  %95 = vmatprep.subr.mxu0 0.0
  %96 = vmatpush2.msra.mxu0 0.0
  %97 = vmatprep.subr.mxu0 0.0
  %98 = vmatpush2.msra.mxu0 0.0
  %99 = vmatprep.subr.mxu0 0.0
  %100 = vmatpush2.msra.mxu0 0.0
  %101 = vmatprep.subr.mxu0 0.0
  %102 = vmatpush2.msra.mxu0 0.0
  %103 = vmatprep.subr.mxu0 0.0
  %104 = vmatpush2.msra.mxu0 0.0
  %105 = vmatprep.subr.mxu0 0.0
  %106 = vmatpush2.msra.mxu0 0.0
  %107 = vmatprep.mubr.f32.mxu0 0.0
  %108 = vmatmul.mubr.f32.gmra.mxu0 %v41
  %v109 = vpop.f32.mrf.mxu0
  %v110 = vadd.f32 %v37, %v109
  %v111 = vpop.f32.mrf.mxu0
  %112 = vdwg.mxu0
  %vm113 = vcmask 58368
  %v114 = vsel %vm113, %v110, -inf
  %v115 = vrot.slane %v114, 4
  %v116 = vmax.f32 %v114, %v115
  %v117 = vrot.slane %v116, 2
  %v118 = vmax.f32 %v116, %v117
  %v119 = vrot.slane %v118, 1
  %v120 = vmax.f32 %v118, %v119
  %v121 = vsub.f32 %v110, %v120
  %v122 = vmul.f32 %v121, 1.442695
  %v123 = vpow.pop %v122
  %v124 = vsel %vm113, %v123, 0.0
  %v125 = vrot.slane %v124, 4
  %v126 = vadd.f32 %v124, %v125
  %v127 = vrot.slane %v126, 2
  %v128 = vadd.f32 %v126, %v127
  %v129 = vrot.slane %v128, 1
  %v130 = vadd.f32 %v128, %v129
  %v131 = vrcp.pop %v130
  %v132 = vmul.f32 %v123, %v131
  %v135 = vunpack.c.l.s4 1966171168
  %v136 = vunpack.c.0.s8 %v135
  %v137 = vlaneseq
  %v138 = vshrl.u32 %v137, 7
  %v139 = vsub.s32 %v136, %v138
  %v140 = vrot.slane %v132, %v139
  %v141 = vcombine.high %v140, %v140
  %v143 = vunpack.c.l.s4 1966171168
  %v144 = vunpack.c.0.s8 %v143
  %v145 = vlaneseq
  %v146 = vshrl.u32 %v145, 7
  %v147 = vsub.s32 %v144, %v146
  %v148 = vrot.slane %v140, %v147
  %v150 = vunpack.c.l.s4 1966171168
  %v151 = vunpack.c.0.s8 %v150
  %v152 = vlaneseq
  %v153 = vshrl.u32 %v152, 7
  %v154 = vsub.s32 %v151, %v153
  %v155 = vrot.slane %v141, %v154
  %v156 = vld [vmem:[%s1] sm:$0xff]
  %v157 = vld [vmem:[%s1 + $0x8] sm:$0xff]
  %vm158 = vcmask 64512
  %v159 = vsel %vm158, %v148, 0
  %161 = vmatprep.subr.mxu0 0.0
  %162 = vmatpush1.msra.mxu0 0.0
  %163 = vmatprep.subr.mxu0 0.0
  %164 = vmatpush1.msra.mxu0 0.0
  %165 = vmatprep.subr.mxu0 0.0
  %166 = vmatpush1.msra.mxu0 0.0
  %167 = vmatprep.subr.mxu0 0.0
  %168 = vmatpush1.msra.mxu0 0.0
  %169 = vmatprep.subr.mxu0 0.0
  %170 = vmatpush1.msra.mxu0 0.0
  %171 = vmatprep.subr.mxu0 0.0
  %172 = vmatpush1.msra.mxu0 0.0
  %173 = vmatprep.subr.mxu0 0.0
  %174 = vmatpush1.msra.mxu0 0.0
  %175 = vmatprep.subr.mxu0 0.0
  %176 = vmatpush1.msra.mxu0 0.0
  %177 = vmatprep.subr.mxu0 0.0
  %178 = vmatpush1.msra.mxu0 0.0
  %179 = vmatprep.subr.mxu0 0.0
  %180 = vmatpush1.msra.mxu0 0.0
  %181 = vmatprep.subr.mxu0 0.0
  %182 = vmatpush1.msra.mxu0 0.0
  %183 = vmatprep.subr.mxu0 0.0
  %184 = vmatpush1.msra.mxu0 0.0
  %185 = vmatprep.subr.mxu0 0.0
  %186 = vmatpush1.msra.mxu0 0.0
  %187 = vmatprep.subr.mxu0 0.0
  %188 = vmatpush1.msra.mxu0 0.0
  %189 = vmatprep.subr.mxu0 0.0
  %190 = vmatpush1.msra.mxu0 0.0
  %191 = vmatprep.subr.mxu0 0.0
  %192 = vmatpush1.msra.mxu0 %v156
  %193 = vmatprep.subr.mxu0 0.0
  %194 = vmatpush2.msra.mxu0 0.0
  %195 = vmatprep.subr.mxu0 0.0
  %196 = vmatpush2.msra.mxu0 0.0
  %197 = vmatprep.subr.mxu0 0.0
  %198 = vmatpush2.msra.mxu0 0.0
  %199 = vmatprep.subr.mxu0 0.0
  %200 = vmatpush2.msra.mxu0 0.0
  %201 = vmatprep.subr.mxu0 0.0
  %202 = vmatpush2.msra.mxu0 0.0
  %203 = vmatprep.subr.mxu0 0.0
  %204 = vmatpush2.msra.mxu0 0.0
  %205 = vmatprep.subr.mxu0 0.0
  %206 = vmatpush2.msra.mxu0 0.0
  %207 = vmatprep.subr.mxu0 0.0
  %208 = vmatpush2.msra.mxu0 0.0
  %209 = vmatprep.subr.mxu0 0.0
  %210 = vmatpush2.msra.mxu0 0.0
  %211 = vmatprep.subr.mxu0 0.0
  %212 = vmatpush2.msra.mxu0 0.0
  %213 = vmatprep.subr.mxu0 0.0
  %214 = vmatpush2.msra.mxu0 0.0
  %215 = vmatprep.subr.mxu0 0.0
  %216 = vmatpush2.msra.mxu0 0.0
  %217 = vmatprep.subr.mxu0 0.0
  %218 = vmatpush2.msra.mxu0 0.0
  %219 = vmatprep.subr.mxu0 0.0
  %220 = vmatpush2.msra.mxu0 0.0
  %221 = vmatprep.subr.mxu0 0.0
  %222 = vmatpush2.msra.mxu0 0.0
  %223 = vmatprep.subr.mxu0 0.0
  %224 = vmatpush2.msra.mxu0 0.0
  %225 = vmatprep.mubr.f32.mxu0 0.0
  %226 = vmatmul.mubr.f32.gmra.mxu0 %v159
  %v227 = vpop.f32.mrf.mxu0
  %v228 = vadd.f32 0.0, %v227
  %v229 = vpop.f32.mrf.mxu0
  %230 = vdwg.mxu0
  %v231 = vsel %vm158, %v155, 0
  %233 = vmatprep.subr.mxu0 0.0
  %234 = vmatpush1.msra.mxu0 0.0
  %235 = vmatprep.subr.mxu0 0.0
  %236 = vmatpush1.msra.mxu0 0.0
  %237 = vmatprep.subr.mxu0 0.0
  %238 = vmatpush1.msra.mxu0 0.0
  %239 = vmatprep.subr.mxu0 0.0
  %240 = vmatpush1.msra.mxu0 0.0
  %241 = vmatprep.subr.mxu0 0.0
  %242 = vmatpush1.msra.mxu0 0.0
  %243 = vmatprep.subr.mxu0 0.0
  %244 = vmatpush1.msra.mxu0 0.0
  %245 = vmatprep.subr.mxu0 0.0
  %246 = vmatpush1.msra.mxu0 0.0
  %247 = vmatprep.subr.mxu0 0.0
  %248 = vmatpush1.msra.mxu0 0.0
  %249 = vmatprep.subr.mxu0 0.0
  %250 = vmatpush1.msra.mxu0 0.0
  %251 = vmatprep.subr.mxu0 0.0
  %252 = vmatpush1.msra.mxu0 0.0
  %253 = vmatprep.subr.mxu0 0.0
  %254 = vmatpush1.msra.mxu0 0.0
  %255 = vmatprep.subr.mxu0 0.0
  %256 = vmatpush1.msra.mxu0 0.0
  %257 = vmatprep.subr.mxu0 0.0
  %258 = vmatpush1.msra.mxu0 0.0
  %259 = vmatprep.subr.mxu0 0.0
  %260 = vmatpush1.msra.mxu0 0.0
  %261 = vmatprep.subr.mxu0 0.0
  %262 = vmatpush1.msra.mxu0 0.0
  %263 = vmatprep.subr.mxu0 0.0
  %264 = vmatpush1.msra.mxu0 %v157
  %265 = vmatprep.subr.mxu0 0.0
  %266 = vmatpush2.msra.mxu0 0.0
  %267 = vmatprep.subr.mxu0 0.0
  %268 = vmatpush2.msra.mxu0 0.0
  %269 = vmatprep.subr.mxu0 0.0
  %270 = vmatpush2.msra.mxu0 0.0
  %271 = vmatprep.subr.mxu0 0.0
  %272 = vmatpush2.msra.mxu0 0.0
  %273 = vmatprep.subr.mxu0 0.0
  %274 = vmatpush2.msra.mxu0 0.0
  %275 = vmatprep.subr.mxu0 0.0
  %276 = vmatpush2.msra.mxu0 0.0
  %277 = vmatprep.subr.mxu0 0.0
  %278 = vmatpush2.msra.mxu0 0.0
  %279 = vmatprep.subr.mxu0 0.0
  %280 = vmatpush2.msra.mxu0 0.0
  %281 = vmatprep.subr.mxu0 0.0
  %282 = vmatpush2.msra.mxu0 0.0
  %283 = vmatprep.subr.mxu0 0.0
  %284 = vmatpush2.msra.mxu0 0.0
  %285 = vmatprep.subr.mxu0 0.0
  %286 = vmatpush2.msra.mxu0 0.0
  %287 = vmatprep.subr.mxu0 0.0
  %288 = vmatpush2.msra.mxu0 0.0
  %289 = vmatprep.subr.mxu0 0.0
  %290 = vmatpush2.msra.mxu0 0.0
  %291 = vmatprep.subr.mxu0 0.0
  %292 = vmatpush2.msra.mxu0 0.0
  %293 = vmatprep.subr.mxu0 0.0
  %294 = vmatpush2.msra.mxu0 0.0
  %295 = vmatprep.subr.mxu0 0.0
  %296 = vmatpush2.msra.mxu0 0.0
  %297 = vmatprep.mubr.f32.mxu0 0.0
  %298 = vmatmul.mubr.f32.gmra.mxu0 %v231
  %v299 = vpop.f32.mrf.mxu0
  %v300 = vadd.f32 0.0, %v299
  %v301 = vpop.f32.mrf.mxu0
  %302 = vdwg.mxu0
  %v303 = vld [vmem:[#allocation2] sm:$0x3]
  %v306 = vrot.slane %v300, 7
  %vm307 = vcmask 1041409
  %v308 = vsel %vm307, %v306, %v228
  %v310 = vadd.f32 %v303, %v308
  %vm311 = vcmask 254976
  %312 = vst.msk [vmem:[#allocation2] sm:$0x3] %vm311, %v310
  // Predicated region
  $region22: #{_attention_forward_impl.1} parent=0 // pred_check
    %p313 = pneg %p17
  $region23: #{_attention_forward_impl.1} parent=0 // pred_check_branch
    %315 = sbr.rel (%p313) target = $region25
  $region24: #{_attention_forward_impl.1} parent=0 // pred_region
    %v316 = vld [vmem:[#allocation2] sm:$0x3]
    %317 = vst.msk [vmem:[%s4] sm:$0x3] %vm311, %v316
  $region25: #{_attention_forward_impl.1} parent=0 // pred_fallthru
    _
  // Predicated region
  $region26: #{_attention_forward_impl.1} parent=0 // pred_check
    _
  $region27: #{_attention_forward_impl.1} parent=0 // pred_check_branch
    %319 = sbr.rel (0) target = $region29
  $region28: #{_attention_forward_impl.1} parent=0 // pred_region
    _
  $region29: #{_attention_forward_impl.1} parent=0 // pred_fallthru
    _
  // Predicated region
  $region30: #{_attention_forward_impl.1} parent=0 // pred_check
    _
  $region31: #{_attention_forward_impl.1} parent=0 // pred_check_branch
    %321 = sbr.rel (0) target = $region33
  $region32: #{_attention_forward_impl.1} parent=0 // pred_region
    _
  $region33: #{_attention_forward_impl.1} parent=0 // pred_fallthru
    _

</llo_original>
